<compile_context>
chip_gen: v6e
topology: v6e:2x2x1
jax: 0.10.0
libtpu: 0.0.40
codegen_flags: <defaults>
</compile_context>

<pallas_src>
import functools

import jax
import jax.numpy as jnp
from jax.experimental import pallas as pl


def mdl_x1_kernel(num_gnn_lyr, num_mlp_lyr, emb_dim, fuse_rest, out_pad,
                  feat_ref, sup_ref, w0_ref, b0_ref, *rest_refs):
    f32, bf16 = jnp.float32, jnp.bfloat16
    D = emb_dim

    if num_mlp_lyr > 1:
        wrest_ref, brest_ref, out_ref = rest_refs
    else:
        (out_ref,) = rest_refs

    # --- GNN propagation: x = sup^k @ feat (sup already bf16, cast outside) --
    sup_bf = sup_ref[...]
    x = feat_ref[...]
    for _ in range(num_gnn_lyr):
        x = jnp.dot(sup_bf, x.astype(bf16), preferred_element_type=f32)

    x_bf = x.astype(bf16)

    # --- fused layer 0: emb Linear + lft MLP[0] + rgt MLP[0] in one MXU pass --
    y0 = jnp.dot(x_bf, w0_ref[...], preferred_element_type=f32) + b0_ref[...]

    # emb = L2 row-normalize of the first D lanes.
    # e * rsqrt(max(sumsq, 1e-24)) == e / max(||e||, 1e-12)  (F.normalize eps).
    e = y0[:, :D]
    sumsq = jnp.sum(e * e, axis=1, keepdims=True)
    emb = e * jax.lax.rsqrt(jnp.maximum(sumsq, 1e-24))
    out_ref[:, :D] = emb

    if fuse_rest:
        # Left/right branches packed side-by-side in lanes: [N, 2D]; layers
        # 1..L-1 use block-diagonal [2D, 2D] weights -> one matmul per layer.
        lr = jnp.tanh(y0[:, D:3 * D])
        if num_mlp_lyr > 1:
            lr = lr + jnp.concatenate([x, x], axis=1)      # residual, layer 0
        for l in range(1, num_mlp_lyr):
            z = jnp.dot(lr.astype(bf16), wrest_ref[l - 1],
                        preferred_element_type=f32) + brest_ref[l - 1]
            z = jnp.tanh(z)
            if l < num_mlp_lyr - 1:
                z = z + lr
            lr = z
        out_ref[:, D:3 * D] = lr
    else:
        # 2D > 128: block-diag would waste MXU passes; run the two branches
        # as separate [N,D]@[D,D] matmuls per layer.
        lft = jnp.tanh(y0[:, D:2 * D])
        rgt = jnp.tanh(y0[:, 2 * D:3 * D])
        if num_mlp_lyr > 1:
            lft = lft + x
            rgt = rgt + x
        for l in range(1, num_mlp_lyr):
            b_l = brest_ref[l - 1]                          # [1, 2D]
            zl = jnp.tanh(jnp.dot(lft.astype(bf16), wrest_ref[l - 1, 0],
                                  preferred_element_type=f32) + b_l[:, :D])
            zr = jnp.tanh(jnp.dot(rgt.astype(bf16), wrest_ref[l - 1, 1],
                                  preferred_element_type=f32) + b_l[:, D:])
            if l < num_mlp_lyr - 1:
                zl = zl + lft
                zr = zr + rgt
            lft, rgt = zl, zr
        out_ref[:, D:2 * D] = lft
        out_ref[:, 2 * D:3 * D] = rgt

    # Zero the padding lanes so the (lane-dense) output block is fully defined.
    if out_pad > 3 * D:
        out_ref[:, 3 * D:] = jnp.zeros((out_ref.shape[0], out_pad - 3 * D), f32)


def prepare_params(params, *, num_mlp_lyr):
    """One-time packing of weights into the kernel's fused layouts."""
    D = params["emb_w"].shape[0]
    bf16 = jnp.bfloat16
    fuse_rest = (2 * D) <= 128   # block-diag fits one MXU pass on all gens

    # Fused layer-0: one [D, 3D] matmul covers emb + lft[0] + rgt[0].
    w0 = jnp.concatenate(
        [params["emb_w"], params["lft_w"][0], params["rgt_w"][0]], axis=1
    ).astype(bf16)
    b0 = jnp.concatenate(
        [params["emb_b"], params["lft_b"][0], params["rgt_b"][0]],
        axis=1).astype(jnp.float32)

    packed = {"w0": w0, "b0": b0}
    if num_mlp_lyr > 1:
        lw = params["lft_w"][1:].astype(bf16)               # [L-1, D, D]
        rw = params["rgt_w"][1:].astype(bf16)
        if fuse_rest:
            zz = jnp.zeros_like(lw)
            packed["wrest"] = jnp.concatenate(
                [jnp.concatenate([lw, zz], axis=2),
                 jnp.concatenate([zz, rw], axis=2)], axis=1)   # [L-1, 2D, 2D]
        else:
            packed["wrest"] = jnp.stack([lw, rw], axis=1)      # [L-1, 2, D, D]
        packed["brest"] = jnp.concatenate(
            [params["lft_b"][1:], params["rgt_b"][1:]], axis=2)  # [L-1, 1, 2D]
    return packed


@functools.partial(jax.jit, static_argnames=("num_gnn_lyr", "num_mlp_lyr"))
def mdl_x1_forward(feat, sup, packed, *, num_gnn_lyr, num_mlp_lyr):
    N, D = feat.shape
    fuse_rest = (2 * D) <= 128
    out_pad = ((3 * D + 127) // 128) * 128    # lane-dense output width

    # bf16 sup halves DMA bytes / VMEM footprint of the mem-bound sup@x hops.
    sup_bf = sup.astype(jnp.bfloat16)

    args = [feat, sup_bf, packed["w0"], packed["b0"]]
    if num_mlp_lyr > 1:
        args += [packed["wrest"], packed["brest"]]

    # Advisory cost estimate so XLA schedules surrounding ops sensibly.
    flops = 2 * num_gnn_lyr * N * N * D + 2 * N * D * 3 * D
    if num_mlp_lyr > 1:
        per_layer = 2 * N * (2 * D) * (2 * D) if fuse_rest else 4 * N * D * D
        flops += (num_mlp_lyr - 1) * per_layer
    transcendentals = num_mlp_lyr * N * 2 * D + N        # tanh + rsqrt
    bytes_accessed = sum(int(a.size) * a.dtype.itemsize for a in args)
    bytes_accessed += N * out_pad * 4

    kern = functools.partial(mdl_x1_kernel, num_gnn_lyr, num_mlp_lyr, D,
                             fuse_rest, out_pad)
    # Tiny problem (N=16, D=32): single grid-free invocation, everything
    # VMEM-resident (default whole-array blocks).  See TODO(synk) above for
    # the large-N tiled variant.
    packed_out = pl.pallas_call(
        kern,
        out_shape=jax.ShapeDtypeStruct((N, out_pad), jnp.float32),
        cost_estimate=pl.CostEstimate(flops=flops,
                                      transcendentals=transcendentals,
                                      bytes_accessed=bytes_accessed),
    )(*args)
    return (packed_out[:, :D],
            packed_out[:, D:2 * D],
            packed_out[:, 2 * D:3 * D])


def init_params(key, emb_dim, num_mlp_lyr):
    """Deterministic PyTorch-Linear-style init; weights stored as [in, out].

    Note: the torch module also has feat_red Linear/Dropout layers, but that
    branch never feeds any returned output, so its parameters are omitted.
    """
    def linear(k, fan_in, fan_out):
        kw, kb = jax.random.split(k)
        bound = 1.0 / (fan_in ** 0.5)
        w = jax.random.uniform(kw, (fan_in, fan_out), jnp.float32, -bound, bound)
        b = jax.random.uniform(kb, (1, fan_out), jnp.float32, -bound, bound)
        return w, b

    keys = jax.random.split(key, 1 + 2 * num_mlp_lyr)
    ki = iter(keys)

    emb_w, emb_b = linear(next(ki), emb_dim, emb_dim)
    lft_w, lft_b = zip(*[linear(next(ki), emb_dim, emb_dim) for _ in range(num_mlp_lyr)])
    rgt_w, rgt_b = zip(*[linear(next(ki), emb_dim, emb_dim) for _ in range(num_mlp_lyr)])

    return {
        "emb_w": emb_w, "emb_b": emb_b,                        # [D,D],   [1,D]
        "lft_w": jnp.stack(lft_w), "lft_b": jnp.stack(lft_b),  # [L,D,D], [L,1,D]
        "rgt_w": jnp.stack(rgt_w), "rgt_b": jnp.stack(rgt_b),  # [L,D,D], [L,1,D]
    }


def reference_forward(feat, sup, params, *, num_gnn_lyr, num_mlp_lyr):
    """Pure-JAX f32 reference mirroring the torch module (eval mode)."""
    x = feat
    for _ in range(num_gnn_lyr):
        x = sup @ x
    e = x @ params["emb_w"] + params["emb_b"]
    e = e / jnp.maximum(jnp.sqrt(jnp.sum(e * e, axis=1, keepdims=True)), 1e-12)
    li, ri = x, x
    for l in range(num_mlp_lyr):
        lo = jnp.tanh(li @ params["lft_w"][l] + params["lft_b"][l])
        if l < num_mlp_lyr - 1:
            lo = lo + li
        li = lo
        ro = jnp.tanh(ri @ params["rgt_w"][l] + params["rgt_b"][l])
        if l < num_mlp_lyr - 1:
            ro = ro + ri
        ri = ro
    return e, li, ri


if __name__ == "__main__":
    N = 16           # number of graph nodes
    EMB_DIM = 32
    NUM_GNN_LYR = 2
    NUM_MLP_LYR_TMP = 3
    # num_feat_lyr / drop_rate: feat_red branch is dead compute in the torch
    # forward and eval-mode dropout is identity, so neither affects the outputs.

    key = jax.random.PRNGKey(0)
    k_feat, k_sup, k_par = jax.random.split(key, 3)

    feat = jax.random.normal(k_feat, (N, EMB_DIM), jnp.float32)
    # Dense "sparse support": random non-negative, row-normalized adjacency-like.
    sup_raw = jax.random.uniform(k_sup, (N, N), jnp.float32)
    sup = sup_raw / jnp.sum(sup_raw, axis=1, keepdims=True)

    params = init_params(k_par, EMB_DIM, NUM_MLP_LYR_TMP)
    packed = prepare_params(params, num_mlp_lyr=NUM_MLP_LYR_TMP)  # one-time

    emb, lft, rgt = mdl_x1_forward(
        feat, sup, packed,
        num_gnn_lyr=NUM_GNN_LYR,
        num_mlp_lyr=NUM_MLP_LYR_TMP,
    )
    jax.block_until_ready((emb, lft, rgt))

    # Sanity check against a pure-JAX f32 reference (loose tol: bf16 MXU inputs).
    emb_r, lft_r, rgt_r = reference_forward(
        feat, sup, params,
        num_gnn_lyr=NUM_GNN_LYR,
        num_mlp_lyr=NUM_MLP_LYR_TMP,
    )
    assert jnp.allclose(emb, emb_r, atol=5e-2, rtol=5e-2)
    assert jnp.allclose(lft, lft_r, atol=5e-2, rtol=5e-2)
    assert jnp.allclose(rgt, rgt_r, atol=5e-2, rtol=5e-2)
    assert emb.shape == (N, EMB_DIM) and lft.shape == (N, EMB_DIM) and rgt.shape == (N, EMB_DIM)

    print("KERNEL_OK")
</pallas_src>

<mosaic_0001>
module attributes {stable_mosaic.version = 11 : i64} {
  func.func @mdl_x1_kernel(%arg0: memref<16x32xf32, #tpu.memory_space<vmem>>, %arg1: memref<16x16xbf16, #tpu.memory_space<vmem>>, %arg2: memref<32x96xbf16, #tpu.memory_space<vmem>>, %arg3: memref<1x96xf32, #tpu.memory_space<vmem>>, %arg4: memref<2x64x64xbf16, #tpu.memory_space<vmem>>, %arg5: memref<2x1x64xf32, #tpu.memory_space<vmem>>, %arg6: memref<16x128xf32, #tpu.memory_space<vmem>>) attributes {dimension_semantics = [], scalar_prefetch = 0 : i64, scratch_operands = 0 : i64, tpu.core_type = #tpu.core_type<tc>} {
    %c0 = arith.constant 0 : index
    %c0_0 = arith.constant 0 : index
    %0 = vector.load %arg1[%c0, %c0_0] : memref<16x16xbf16, #tpu.memory_space<vmem>>, vector<16x16xbf16>
    %c0_1 = arith.constant 0 : index
    %c0_2 = arith.constant 0 : index
    %1 = vector.load %arg0[%c0_1, %c0_2] : memref<16x32xf32, #tpu.memory_space<vmem>>, vector<16x32xf32>
    %2 = arith.truncf %1 : vector<16x32xf32> to vector<16x32xbf16>
    %cst = arith.constant dense<0.000000e+00> : vector<16x32xf32>
    %3 = tpu.matmul %0, %2, %cst {dimension_numbers = #tpu.dot_dimension_numbers<[1], [0], [0], [1], [0, 0, 1, 1], [], []>} : vector<16x16xbf16>, vector<16x32xbf16>, vector<16x32xf32> -> vector<16x32xf32>
    %4 = arith.truncf %3 : vector<16x32xf32> to vector<16x32xbf16>
    %cst_3 = arith.constant dense<0.000000e+00> : vector<16x32xf32>
    %5 = tpu.matmul %0, %4, %cst_3 {dimension_numbers = #tpu.dot_dimension_numbers<[1], [0], [0], [1], [0, 0, 1, 1], [], []>} : vector<16x16xbf16>, vector<16x32xbf16>, vector<16x32xf32> -> vector<16x32xf32>
    %6 = arith.truncf %5 : vector<16x32xf32> to vector<16x32xbf16>
    %c0_4 = arith.constant 0 : index
    %c0_5 = arith.constant 0 : index
    %7 = vector.load %arg2[%c0_4, %c0_5] : memref<32x96xbf16, #tpu.memory_space<vmem>>, vector<32x96xbf16>
    %cst_6 = arith.constant dense<0.000000e+00> : vector<16x96xf32>
    %8 = tpu.matmul %6, %7, %cst_6 {dimension_numbers = #tpu.dot_dimension_numbers<[1], [0], [0], [1], [0, 0, 1, 1], [], []>} : vector<16x32xbf16>, vector<32x96xbf16>, vector<16x96xf32> -> vector<16x96xf32>
    %c0_7 = arith.constant 0 : index
    %c0_8 = arith.constant 0 : index
    %9 = vector.load %arg3[%c0_7, %c0_8] : memref<1x96xf32, #tpu.memory_space<vmem>>, vector<1x96xf32>
    %10 = vector.broadcast %9 : vector<1x96xf32> to vector<16x96xf32>
    %11 = arith.addf %8, %10 : vector<16x96xf32>
    %12 = vector.extract_strided_slice %11 {offsets = [0, 0], sizes = [16, 32], strides = [1, 1]} : vector<16x96xf32> to vector<16x32xf32>
    %13 = arith.mulf %12, %12 : vector<16x32xf32>
    %cst_9 = arith.constant dense<0.000000e+00> : vector<16xf32>
    %14 = vector.multi_reduction <add>, %13, %cst_9 [1] : vector<16x32xf32> to vector<16xf32>
    %15 = vector.shape_cast %14 : vector<16xf32> to vector<16x1xf32>
    %cst_10 = arith.constant 1.000000e-24 : f32
    %16 = vector.broadcast %cst_10 : f32 to vector<16x1xf32>
    %17 = arith.maximumf %15, %16 : vector<16x1xf32>
    %18 = math.rsqrt %17 : vector<16x1xf32>
    %19 = vector.broadcast %18 : vector<16x1xf32> to vector<16x32xf32>
    %20 = arith.mulf %12, %19 : vector<16x32xf32>
    %c0_11 = arith.constant 0 : index
    %c0_12 = arith.constant 0 : index
    %21 = vector.load %arg6[%c0_11, %c0_12] : memref<16x128xf32, #tpu.memory_space<vmem>>, vector<16x32xf32>
    tpu.vector_store %arg6[%c0_11, %c0_12], %20 {strides = array<i32>} : memref<16x128xf32, #tpu.memory_space<vmem>>, vector<16x32xf32>,
    %22 = vector.extract_strided_slice %11 {offsets = [0, 32], sizes = [16, 64], strides = [1, 1]} : vector<16x96xf32> to vector<16x64xf32>
    %23 = math.tanh %22 : vector<16x64xf32>
    %24 = tpu.concatenate %5, %5 in 1 : vector<16x32xf32>, vector<16x32xf32> -> vector<16x64xf32>
    %25 = arith.addf %23, %24 : vector<16x64xf32>
    %26 = arith.truncf %25 : vector<16x64xf32> to vector<16x64xbf16>
    %c0_13 = arith.constant 0 : index
    %c0_14 = arith.constant 0 : index
    %c0_15 = arith.constant 0 : index
    %27 = vector.load %arg4[%c0_13, %c0_14, %c0_15] : memref<2x64x64xbf16, #tpu.memory_space<vmem>>, vector<1x64x64xbf16>
    %28 = vector.shape_cast %27 : vector<1x64x64xbf16> to vector<64x64xbf16>
    %cst_16 = arith.constant dense<0.000000e+00> : vector<16x64xf32>
    %29 = tpu.matmul %26, %28, %cst_16 {dimension_numbers = #tpu.dot_dimension_numbers<[1], [0], [0], [1], [0, 0, 1, 1], [], []>} : vector<16x64xbf16>, vector<64x64xbf16>, vector<16x64xf32> -> vector<16x64xf32>
    %c0_17 = arith.constant 0 : index
    %c0_18 = arith.constant 0 : index
    %c0_19 = arith.constant 0 : index
    %30 = vector.load %arg5[%c0_17, %c0_18, %c0_19] : memref<2x1x64xf32, #tpu.memory_space<vmem>>, vector<1x1x64xf32>
    %31 = vector.shape_cast %30 : vector<1x1x64xf32> to vector<1x64xf32>
    %32 = vector.broadcast %31 : vector<1x64xf32> to vector<16x64xf32>
    %33 = arith.addf %29, %32 : vector<16x64xf32>
    %34 = math.tanh %33 : vector<16x64xf32>
    %35 = arith.addf %34, %25 : vector<16x64xf32>
    %36 = arith.truncf %35 : vector<16x64xf32> to vector<16x64xbf16>
    %c1 = arith.constant 1 : index
    %c0_20 = arith.constant 0 : index
    %c0_21 = arith.constant 0 : index
    %37 = vector.load %arg4[%c1, %c0_20, %c0_21] : memref<2x64x64xbf16, #tpu.memory_space<vmem>>, vector<1x64x64xbf16>
    %38 = vector.shape_cast %37 : vector<1x64x64xbf16> to vector<64x64xbf16>
    %cst_22 = arith.constant dense<0.000000e+00> : vector<16x64xf32>
    %39 = tpu.matmul %36, %38, %cst_22 {dimension_numbers = #tpu.dot_dimension_numbers<[1], [0], [0], [1], [0, 0, 1, 1], [], []>} : vector<16x64xbf16>, vector<64x64xbf16>, vector<16x64xf32> -> vector<16x64xf32>
    %c1_23 = arith.constant 1 : index
    %c0_24 = arith.constant 0 : index
    %c0_25 = arith.constant 0 : index
    %40 = vector.load %arg5[%c1_23, %c0_24, %c0_25] : memref<2x1x64xf32, #tpu.memory_space<vmem>>, vector<1x1x64xf32>
    %41 = vector.shape_cast %40 : vector<1x1x64xf32> to vector<1x64xf32>
    %42 = vector.broadcast %41 : vector<1x64xf32> to vector<16x64xf32>
    %43 = arith.addf %39, %42 : vector<16x64xf32>
    %44 = math.tanh %43 : vector<16x64xf32>
    %c0_26 = arith.constant 0 : index
    %c32 = arith.constant 32 : index
    %45 = vector.load %arg6[%c0_26, %c32] : memref<16x128xf32, #tpu.memory_space<vmem>>, vector<16x64xf32>
    tpu.vector_store %arg6[%c0_26, %c32], %44 {strides = array<i32>} : memref<16x128xf32, #tpu.memory_space<vmem>>, vector<16x64xf32>,
    %cst_27 = arith.constant 0.000000e+00 : f32
    %46 = vector.broadcast %cst_27 : f32 to vector<16x32xf32>
    %c0_28 = arith.constant 0 : index
    %c96 = arith.constant 96 : index
    %47 = vector.load %arg6[%c0_28, %c96] : memref<16x128xf32, #tpu.memory_space<vmem>>, vector<16x32xf32>
    tpu.vector_store %arg6[%c0_28, %c96], %46 {strides = array<i32>} : memref<16x128xf32, #tpu.memory_space<vmem>>, vector<16x32xf32>,
    return
  }
}

</mosaic_0001>

<llo_original>
// kernel: mdl_x1_forward.1
$region0: #{mdl_x1_forward.1}
  #allocation0 [shape = 'u32[]', space=smem, size = 0x4, offset = 0x4, fixed_abs, tag = 'smem constant byte address 0x4 - core index']
  #allocation1 [shape = 'u32[144,128]{1,0:T(1,128)}', space=vmem, size = 0x12000, scoped, tag = 'internal scratch']
  %s0 = inlined_call_operand.vmem [shape: f32[16,32], index: 0, kind: input, shape index: {}]
  %s1 = inlined_call_operand.vmem [shape: bf16[16,16], index: 1, kind: input, shape index: {}]
  %s2 = inlined_call_operand.hbm [shape: bf16[32,96], index: 2, kind: input, shape index: {}]
  %s3 = inlined_call_operand.vmem [shape: f32[1,96], index: 3, kind: input, shape index: {}]
  %s4 = inlined_call_operand.hbm [shape: bf16[2,64,64], index: 4, kind: input, shape index: {}]
  %s5 = inlined_call_operand.vmem [shape: f32[2,1,64], index: 5, kind: input, shape index: {}]
  %s6 = inlined_call_operand.vmem [shape: f32[16,128], index: 6, kind: output, shape index: {}]
  %s7 = sld [smem:[#allocation0]]
  $region42: #{mdl_x1_forward.1} parent=0
    _
  %s9 = ssub.s32 1, %s7
  %s10 = scalar_select 0, %s9, %s7
  $region1: #{mdl_x1_forward.1} parent=0
    #allocation2 [shape = 'u8[8192]{0}', space=vmem, size = 0x2000, scoped, tag = 'input window, operand 2, single buffered']
    #allocation3 [shape = 's32[1]{0}', space=sflag, size = 0x4, scoped, tag = 'scoped memory for mdl_x1_forward.1']
    #allocation4 [shape = 'u8[32768]{0}', space=vmem, size = 0x8000, scoped, tag = 'input window, operand 4, single buffered']
    #allocation5 [shape = 's32[1]{0}', space=sflag, size = 0x4, scoped, tag = 'scoped memory for mdl_x1_forward.1']
    %11 = vsyncpa [#allocation3], 0
    %12 = vsyncpa [#allocation5], 0
    // Predicated region
    $region2: #{mdl_x1_forward.1} parent=1 // pred_check
      _
    $region3: #{mdl_x1_forward.1} parent=1 // pred_check_branch
      %14 = sbr.rel (0) target = $region5
    $region4: #{mdl_x1_forward.1} parent=1 // pred_region
      _
    $region5: #{mdl_x1_forward.1} parent=1 // pred_fallthru
      _
    // Predicated region
    $region6: #{mdl_x1_forward.1} parent=1 // pred_check
      _
    $region7: #{mdl_x1_forward.1} parent=1 // pred_check_branch
      %16 = sbr.rel (0) target = $region9
    $region8: #{mdl_x1_forward.1} parent=1 // pred_region
      _
    $region9: #{mdl_x1_forward.1} parent=1 // pred_fallthru
      _
    // Predicated region
    $region10: #{mdl_x1_forward.1} parent=1 // pred_check
      _
    $region11: #{mdl_x1_forward.1} parent=1 // pred_check_branch
      %18 = sbr.rel (0) target = $region13
    $region12: #{mdl_x1_forward.1} parent=1 // pred_region
      %s20 = ssub.s32 256, 256
      %21 = vsyncadd [#allocation3], %s20
      %s22 = sshll.u32 [#allocation2], 4
      %s23 = int_to_ptr.vmem [resolvable:$true] %s22
      %28 = dma.hbm_to_vmem [thread:$0]  %s2, 256, %s23, [#allocation3], 64, 64, 4
    $region13: #{mdl_x1_forward.1} parent=1 // pred_fallthru
      _
    // Predicated region
    $region14: #{mdl_x1_forward.1} parent=1 // pred_check
      _
    $region15: #{mdl_x1_forward.1} parent=1 // pred_check_branch
      %30 = sbr.rel (0) target = $region17
    $region16: #{mdl_x1_forward.1} parent=1 // pred_region
      _
    $region17: #{mdl_x1_forward.1} parent=1 // pred_fallthru
      _
    // Predicated region
    $region18: #{mdl_x1_forward.1} parent=1 // pred_check
      _
    $region19: #{mdl_x1_forward.1} parent=1 // pred_check_branch
      %32 = sbr.rel (0) target = $region21
    $region20: #{mdl_x1_forward.1} parent=1 // pred_region
      %s34 = ssub.s32 1024, 1024
      %35 = vsyncadd [#allocation5], %s34
      %s36 = sshll.u32 [#allocation4], 4
      %s37 = int_to_ptr.vmem [resolvable:$true] %s36
      %42 = dma.hbm_to_vmem [thread:$0]  %s4, 1024, %s37, [#allocation5], 64, 64, 4
    $region21: #{mdl_x1_forward.1} parent=1 // pred_fallthru
      _
    // Predicated region
    $region22: #{mdl_x1_forward.1} parent=1 // pred_check
      _
    $region23: #{mdl_x1_forward.1} parent=1 // pred_check_branch
      %44 = sbr.rel (0) target = $region25
    $region24: #{mdl_x1_forward.1} parent=1 // pred_region
      _
    $region25: #{mdl_x1_forward.1} parent=1 // pred_fallthru
      _
    // Predicated region
    $region26: #{mdl_x1_forward.1} parent=1 // pred_check
      _
    $region27: #{mdl_x1_forward.1} parent=1 // pred_check_branch
      %46 = sbr.rel (0) target = $region29
    $region28: #{mdl_x1_forward.1} parent=1 // pred_region
      %47 = dma.done [#allocation3], 256
    $region29: #{mdl_x1_forward.1} parent=1 // pred_fallthru
      _
    // Predicated region
    $region30: #{mdl_x1_forward.1} parent=1 // pred_check
      _
    $region31: #{mdl_x1_forward.1} parent=1 // pred_check_branch
      %49 = sbr.rel (0) target = $region33
    $region32: #{mdl_x1_forward.1} parent=1 // pred_region
      %50 = dma.done [#allocation5], 1024
    $region33: #{mdl_x1_forward.1} parent=1 // pred_fallthru
      _
    %v52 = vld [vmem:[%s1] sm:$0xf]
    %v53 = vld [vmem:[%s1 + $0x4] sm:$0xf]
    %v54 = vld [vmem:[%s0] sm:$0xff]
    %v55 = vld [vmem:[%s0 + $0x8] sm:$0xff]
    %v56 = vpack.c.bf16 %v55, %v54
    %v59 = vunpack.c.l.b16 %v52
    %v60 = vunpack.c.l.b16 %v53
    %v61 = vpack.c.b16 %v60, %v59
    %vm62 = vcmask 130048
    %v64 = vsel %vm62, %v61, 0
    %66 = vmatprep.subr.bf16.mxu0 0
    %67 = vmatpush1.bf16.msra.mxu0 0
    %68 = vmatprep.subr.bf16.mxu0 0
    %69 = vmatpush1.bf16.msra.mxu0 0
    %70 = vmatprep.subr.bf16.mxu0 0
    %71 = vmatpush1.bf16.msra.mxu0 0
    %72 = vmatprep.subr.bf16.mxu0 0
    %73 = vmatpush1.bf16.msra.mxu0 0
    %74 = vmatprep.subr.bf16.mxu0 0
    %75 = vmatpush1.bf16.msra.mxu0 0
    %76 = vmatprep.subr.bf16.mxu0 0
    %77 = vmatpush1.bf16.msra.mxu0 0
    %78 = vmatprep.subr.bf16.mxu0 0
    %79 = vmatpush1.bf16.msra.mxu0 0
    %80 = vmatprep.subr.bf16.mxu0 0
    %81 = vmatpush1.bf16.msra.mxu0 %v56
    %82 = vmatprep.subr.bf16.mxu0 0
    %83 = vmatpush2.bf16.msra.mxu0 0
    %84 = vmatprep.subr.bf16.mxu0 0
    %85 = vmatpush2.bf16.msra.mxu0 0
    %86 = vmatprep.subr.bf16.mxu0 0
    %87 = vmatpush2.bf16.msra.mxu0 0
    %88 = vmatprep.subr.bf16.mxu0 0
    %89 = vmatpush2.bf16.msra.mxu0 0
    %90 = vmatprep.subr.bf16.mxu0 0
    %91 = vmatpush2.bf16.msra.mxu0 0
    %92 = vmatprep.subr.bf16.mxu0 0
    %93 = vmatpush2.bf16.msra.mxu0 0
    %94 = vmatprep.subr.bf16.mxu0 0
    %95 = vmatpush2.bf16.msra.mxu0 0
    %96 = vmatprep.subr.bf16.mxu0 0
    %97 = vmatpush2.bf16.msra.mxu0 0
    %98 = vmatprep.mubr.bf16.mxu0 0
    %99 = vmatmul.mubr.bf16.gmra.mxu0 %v64
    %v100 = vpop.f32.mrf.mxu0
    %v101 = vadd.f32 0.0, %v100
    %v102 = vpop.f32.mrf.mxu0
    %v103 = vpop.f32.mrf.mxu0
    %v104 = vadd.f32 0.0, %v103
    %v105 = vpop.f32.mrf.mxu0
    %106 = vdwg.mxu0
    %v107 = vpack.c.bf16 %v104, %v101
    %108 = vmatprep.subr.bf16.mxu0 0
    %109 = vmatpush1.bf16.msra.mxu0 0
    %110 = vmatprep.subr.bf16.mxu0 0
    %111 = vmatpush1.bf16.msra.mxu0 0
    %112 = vmatprep.subr.bf16.mxu0 0
    %113 = vmatpush1.bf16.msra.mxu0 0
    %114 = vmatprep.subr.bf16.mxu0 0
    %115 = vmatpush1.bf16.msra.mxu0 0
    %116 = vmatprep.subr.bf16.mxu0 0
    %117 = vmatpush1.bf16.msra.mxu0 0
    %118 = vmatprep.subr.bf16.mxu0 0
    %119 = vmatpush1.bf16.msra.mxu0 0
    %120 = vmatprep.subr.bf16.mxu0 0
    %121 = vmatpush1.bf16.msra.mxu0 0
    %122 = vmatprep.subr.bf16.mxu0 0
    %123 = vmatpush1.bf16.msra.mxu0 %v107
    %124 = vmatprep.subr.bf16.mxu0 0
    %125 = vmatpush2.bf16.msra.mxu0 0
    %126 = vmatprep.subr.bf16.mxu0 0
    %127 = vmatpush2.bf16.msra.mxu0 0
    %128 = vmatprep.subr.bf16.mxu0 0
    %129 = vmatpush2.bf16.msra.mxu0 0
    %130 = vmatprep.subr.bf16.mxu0 0
    %131 = vmatpush2.bf16.msra.mxu0 0
    %132 = vmatprep.subr.bf16.mxu0 0
    %133 = vmatpush2.bf16.msra.mxu0 0
    %134 = vmatprep.subr.bf16.mxu0 0
    %135 = vmatpush2.bf16.msra.mxu0 0
    %136 = vmatprep.subr.bf16.mxu0 0
    %137 = vmatpush2.bf16.msra.mxu0 0
    %138 = vmatprep.subr.bf16.mxu0 0
    %139 = vmatpush2.bf16.msra.mxu0 0
    %140 = vmatprep.mubr.bf16.mxu0 0
    %141 = vmatmul.mubr.bf16.gmra.mxu0 %v64
    %v142 = vpop.f32.mrf.mxu0
    %v143 = vadd.f32 0.0, %v142
    %v144 = vpop.f32.mrf.mxu0
    %v145 = vpop.f32.mrf.mxu0
    %v146 = vadd.f32 0.0, %v145
    %v147 = vpop.f32.mrf.mxu0
    %148 = vdwg.mxu0
    %v149 = vpack.c.bf16 %v146, %v143
    %v150 = vld [vmem:[#allocation2] sm:$0xf]
    %v151 = vld [vmem:[#allocation2 + $0x4] sm:$0xf]
    %v152 = vld [vmem:[#allocation2 + $0x8] sm:$0xf]
    %v153 = vld [vmem:[#allocation2 + $0xc] sm:$0xf]
    %v154 = vld [vmem:[%s3] sm:$0x1]
    %v156 = vlaneseq
    %v157 = vshrl.u32 %v156, 7
    %v158 = vsub.s32 0, %v157
    %v159 = vrot.slane %v154, %v158
    %v165 = vunpack.c.l.b16 %v150
    %v166 = vunpack.c.l.b16 %v151
    %v167 = vunpack.c.l.b16 %v152
    %v168 = vunpack.c.l.b16 %v153
    %v169 = vpack.c.b16 %v166, %v165
    %v170 = vpack.c.b16 %v168, %v167
    %vm173 = vcmask 261120
    %v175 = vsel %vm173, %v149, 0
    %177 = vmatprep.subr.bf16.mxu0 0
    %178 = vmatpush1.bf16.msra.mxu0 0
    %179 = vmatprep.subr.bf16.mxu0 0
    %180 = vmatpush1.bf16.msra.mxu0 0
    %181 = vmatprep.subr.bf16.mxu0 0
    %182 = vmatpush1.bf16.msra.mxu0 0
    %183 = vmatprep.subr.bf16.mxu0 0
    %184 = vmatpush1.bf16.msra.mxu0 0
    %185 = vmatprep.subr.bf16.mxu0 0
    %186 = vmatpush1.bf16.msra.mxu0 0
    %187 = vmatprep.subr.bf16.mxu0 0
    %188 = vmatpush1.bf16.msra.mxu0 0
    %189 = vmatprep.subr.bf16.mxu0 0
    %190 = vmatpush1.bf16.msra.mxu0 %v170
    %191 = vmatprep.subr.bf16.mxu0 0
    %192 = vmatpush1.bf16.msra.mxu0 %v169
    %193 = vmatprep.subr.bf16.mxu0 0
    %194 = vmatpush2.bf16.msra.mxu0 0
    %195 = vmatprep.subr.bf16.mxu0 0
    %196 = vmatpush2.bf16.msra.mxu0 0
    %197 = vmatprep.subr.bf16.mxu0 0
    %198 = vmatpush2.bf16.msra.mxu0 0
    %199 = vmatprep.subr.bf16.mxu0 0
    %200 = vmatpush2.bf16.msra.mxu0 0
    %201 = vmatprep.subr.bf16.mxu0 0
    %202 = vmatpush2.bf16.msra.mxu0 0
    %203 = vmatprep.subr.bf16.mxu0 0
    %204 = vmatpush2.bf16.msra.mxu0 0
    %205 = vmatprep.subr.bf16.mxu0 0
    %206 = vmatpush2.bf16.msra.mxu0 0
    %207 = vmatprep.subr.bf16.mxu0 0
    %208 = vmatpush2.bf16.msra.mxu0 0
    %209 = vmatprep.mubr.bf16.mxu0 0
    %210 = vmatmul.mubr.bf16.gmra.mxu0 %v175
    %v211 = vpop.f32.mrf.mxu0
    %v212 = vadd.f32 %v159, %v211
    %v213 = vpop.f32.mrf.mxu0
    %v214 = vpop.f32.mrf.mxu0
    %v215 = vadd.f32 %v159, %v214
    %v216 = vpop.f32.mrf.mxu0
    %217 = vdwg.mxu0
    %v218 = vmul.f32 %v212, %v212
    %v219 = vmul.f32 %v215, %v215
    %v220 = vsel %vm173, %v218, 0.0
    %221 = vadd.xlane.f32.xlu0 %v220
    %v222 = vpop.xlane.xlu0 %221
    %v223 = vsel %vm173, %v219, 0.0
    %224 = vadd.xlane.f32.xlu0 %v223
    %v225 = vpop.xlane.xlu0 %224
    %v226 = vmax.f32 %v222, 1e-24
    %v227 = vmax.f32 %v225, 1e-24
    %v228 = vrsqrt.pop %v226
    %v229 = vrsqrt.pop %v227
    %v230 = vmul.f32 %v212, %v228
    %v231 = vmul.f32 %v215, %v229
    %232 = vst.msk [vmem:[%s6] sm:$0xff] %vm173, %v230
    %233 = vst.msk [vmem:[%s6 + $0x8] sm:$0xff] %vm173, %v231
    %v234 = vtanh.pop %v212
    %v235 = vtanh.pop %v215
    %238 = vrot.lane.b32.xlu0 %v143, 32
    %v239 = vpop.permute.xlu0 %238
    %240 = vrot.lane.b32.xlu0 %v146, 32
    %v241 = vpop.permute.xlu0 %240
    %v244 = vsel %vm173, %v143, %v239
    %v245 = vsel %vm173, %v146, %v241
    %248 = vrot.lane.b32.xlu0 %v244, 32
    %v249 = vpop.permute.xlu0 %248
    %250 = vrot.lane.b32.xlu0 %v245, 32
    %v251 = vpop.permute.xlu0 %250
    %v254 = vadd.f32 %v234, %v249
    %v255 = vadd.f32 %v235, %v251
    %v256 = vpack.c.bf16 %v255, %v254
    %v257 = vld [vmem:[#allocation4] sm:$0xf]
    %v258 = vld [vmem:[#allocation4 + $0x4] sm:$0xf]
    %v259 = vld [vmem:[#allocation4 + $0x8] sm:$0xf]
    %v260 = vld [vmem:[#allocation4 + $0xc] sm:$0xf]
    %v261 = vld [vmem:[#allocation4 + $0x10] sm:$0xf]
    %v262 = vld [vmem:[#allocation4 + $0x14] sm:$0xf]
    %v263 = vld [vmem:[#allocation4 + $0x18] sm:$0xf]
    %v264 = vld [vmem:[#allocation4 + $0x1c] sm:$0xf]
    %v265 = vld [vmem:[%s5] sm:$0x1]
    %v267 = vlaneseq
    %v268 = vshrl.u32 %v267, 7
    %v269 = vsub.s32 0, %v268
    %v270 = vrot.slane %v265, %v269
    %273 = vrot.lane.b32.xlu0 %v256, 96
    %v274 = vpop.permute.xlu0 %273
    %v283 = vunpack.c.l.b16 %v257
    %v284 = vunpack.c.l.b16 %v258
    %v285 = vunpack.c.l.b16 %v259
    %v286 = vunpack.c.l.b16 %v260
    %v287 = vunpack.c.l.b16 %v261
    %v288 = vunpack.c.l.b16 %v262
    %v289 = vunpack.c.l.b16 %v263
    %v290 = vunpack.c.l.b16 %v264
    %v291 = vpack.c.b16 %v284, %v283
    %v292 = vpack.c.b16 %v286, %v285
    %v293 = vpack.c.b16 %v288, %v287
    %v294 = vpack.c.b16 %v290, %v289
    %vm299 = vcmask 523264
    %v301 = vsel %vm299, %v274, 0
    %303 = vmatprep.subr.bf16.mxu0 0
    %304 = vmatpush1.bf16.msra.mxu0 0
    %305 = vmatprep.subr.bf16.mxu0 0
    %306 = vmatpush1.bf16.msra.mxu0 0
    %307 = vmatprep.subr.bf16.mxu0 0
    %308 = vmatpush1.bf16.msra.mxu0 0
    %309 = vmatprep.subr.bf16.mxu0 0
    %310 = vmatpush1.bf16.msra.mxu0 0
    %311 = vmatprep.subr.bf16.mxu0 0
    %312 = vmatpush1.bf16.msra.mxu0 %v294
    %313 = vmatprep.subr.bf16.mxu0 0
    %314 = vmatpush1.bf16.msra.mxu0 %v293
    %315 = vmatprep.subr.bf16.mxu0 0
    %316 = vmatpush1.bf16.msra.mxu0 %v292
    %317 = vmatprep.subr.bf16.mxu0 0
    %318 = vmatpush1.bf16.msra.mxu0 %v291
    %319 = vmatprep.subr.bf16.mxu0 0
    %320 = vmatpush2.bf16.msra.mxu0 0
    %321 = vmatprep.subr.bf16.mxu0 0
    %322 = vmatpush2.bf16.msra.mxu0 0
    %323 = vmatprep.subr.bf16.mxu0 0
    %324 = vmatpush2.bf16.msra.mxu0 0
    %325 = vmatprep.subr.bf16.mxu0 0
    %326 = vmatpush2.bf16.msra.mxu0 0
    %327 = vmatprep.subr.bf16.mxu0 0
    %328 = vmatpush2.bf16.msra.mxu0 0
    %329 = vmatprep.subr.bf16.mxu0 0
    %330 = vmatpush2.bf16.msra.mxu0 0
    %331 = vmatprep.subr.bf16.mxu0 0
    %332 = vmatpush2.bf16.msra.mxu0 0
    %333 = vmatprep.subr.bf16.mxu0 0
    %334 = vmatpush2.bf16.msra.mxu0 0
    %335 = vmatprep.mubr.bf16.mxu0 0
    %336 = vmatmul.mubr.bf16.gmra.mxu0 %v301
    %v337 = vpop.f32.mrf.mxu0
    %v338 = vadd.f32 %v270, %v337
    %v339 = vpop.f32.mrf.mxu0
    %v340 = vpop.f32.mrf.mxu0
    %v341 = vadd.f32 %v270, %v340
    %v342 = vpop.f32.mrf.mxu0
    %343 = vdwg.mxu0
    %v344 = vtanh.pop %v338
    %v345 = vtanh.pop %v341
    %348 = vrot.lane.b32.xlu0 %v254, 96
    %v349 = vpop.permute.xlu0 %348
    %350 = vrot.lane.b32.xlu0 %v255, 96
    %v351 = vpop.permute.xlu0 %350
    %v354 = vadd.f32 %v344, %v349
    %v355 = vadd.f32 %v345, %v351
    %v356 = vpack.c.bf16 %v355, %v354
    %s357 = scalar_lea.vmem [#allocation4], 32
    %v358 = vld [vmem:[%s357] sm:$0xf]
    %v359 = vld [vmem:[%s357 + $0x4] sm:$0xf]
    %v360 = vld [vmem:[%s357 + $0x8] sm:$0xf]
    %v361 = vld [vmem:[%s357 + $0xc] sm:$0xf]
    %v362 = vld [vmem:[%s357 + $0x10] sm:$0xf]
    %v363 = vld [vmem:[%s357 + $0x14] sm:$0xf]
    %v364 = vld [vmem:[%s357 + $0x18] sm:$0xf]
    %v365 = vld [vmem:[%s357 + $0x1c] sm:$0xf]
    %s366 = scalar_lea.vmem %s5, 1
    %v367 = vld [vmem:[%s366] sm:$0x1]
    %v369 = vlaneseq
    %v370 = vshrl.u32 %v369, 7
    %v371 = vsub.s32 0, %v370
    %v372 = vrot.slane %v367, %v371
    %v382 = vunpack.c.l.b16 %v358
    %v383 = vunpack.c.l.b16 %v359
    %v384 = vunpack.c.l.b16 %v360
    %v385 = vunpack.c.l.b16 %v361
    %v386 = vunpack.c.l.b16 %v362
    %v387 = vunpack.c.l.b16 %v363
    %v388 = vunpack.c.l.b16 %v364
    %v389 = vunpack.c.l.b16 %v365
    %v390 = vpack.c.b16 %v383, %v382
    %v391 = vpack.c.b16 %v385, %v384
    %v392 = vpack.c.b16 %v387, %v386
    %v393 = vpack.c.b16 %v389, %v388
    %v399 = vsel %vm299, %v356, 0
    %401 = vmatprep.subr.bf16.mxu0 0
    %402 = vmatpush1.bf16.msra.mxu0 0
    %403 = vmatprep.subr.bf16.mxu0 0
    %404 = vmatpush1.bf16.msra.mxu0 0
    %405 = vmatprep.subr.bf16.mxu0 0
    %406 = vmatpush1.bf16.msra.mxu0 0
    %407 = vmatprep.subr.bf16.mxu0 0
    %408 = vmatpush1.bf16.msra.mxu0 0
    %409 = vmatprep.subr.bf16.mxu0 0
    %410 = vmatpush1.bf16.msra.mxu0 %v393
    %411 = vmatprep.subr.bf16.mxu0 0
    %412 = vmatpush1.bf16.msra.mxu0 %v392
    %413 = vmatprep.subr.bf16.mxu0 0
    %414 = vmatpush1.bf16.msra.mxu0 %v391
    %415 = vmatprep.subr.bf16.mxu0 0
    %416 = vmatpush1.bf16.msra.mxu0 %v390
    %417 = vmatprep.subr.bf16.mxu0 0
    %418 = vmatpush2.bf16.msra.mxu0 0
    %419 = vmatprep.subr.bf16.mxu0 0
    %420 = vmatpush2.bf16.msra.mxu0 0
    %421 = vmatprep.subr.bf16.mxu0 0
    %422 = vmatpush2.bf16.msra.mxu0 0
    %423 = vmatprep.subr.bf16.mxu0 0
    %424 = vmatpush2.bf16.msra.mxu0 0
    %425 = vmatprep.subr.bf16.mxu0 0
    %426 = vmatpush2.bf16.msra.mxu0 0
    %427 = vmatprep.subr.bf16.mxu0 0
    %428 = vmatpush2.bf16.msra.mxu0 0
    %429 = vmatprep.subr.bf16.mxu0 0
    %430 = vmatpush2.bf16.msra.mxu0 0
    %431 = vmatprep.subr.bf16.mxu0 0
    %432 = vmatpush2.bf16.msra.mxu0 0
    %433 = vmatprep.mubr.bf16.mxu0 0
    %434 = vmatmul.mubr.bf16.gmra.mxu0 %v399
    %v435 = vpop.f32.mrf.mxu0
    %v436 = vadd.f32 %v372, %v435
    %v437 = vpop.f32.mrf.mxu0
    %v438 = vpop.f32.mrf.mxu0
    %v439 = vadd.f32 %v372, %v438
    %v440 = vpop.f32.mrf.mxu0
    %441 = vdwg.mxu0
    %v442 = vtanh.pop %v436
    %v443 = vtanh.pop %v439
    %446 = vrot.lane.b32.xlu0 %v442, 32
    %v447 = vpop.permute.xlu0 %446
    %448 = vrot.lane.b32.xlu0 %v443, 32
    %v449 = vpop.permute.xlu0 %448
    %vm452 = vcmask 785664
    %453 = vst.msk [vmem:[%s6] sm:$0xff] %vm452, %v447
    %454 = vst.msk [vmem:[%s6 + $0x8] sm:$0xff] %vm452, %v449
    %vm455 = vcmask 1048320
    %456 = vst.msk [vmem:[%s6] sm:$0xff] %vm455, 0.0
    %457 = vst.msk [vmem:[%s6 + $0x8] sm:$0xff] %vm455, 0.0
    // Predicated region
    $region34: #{mdl_x1_forward.1} parent=1 // pred_check
      _
    $region35: #{mdl_x1_forward.1} parent=1 // pred_check_branch
      %459 = sbr.rel (0) target = $region37
    $region36: #{mdl_x1_forward.1} parent=1 // pred_region
      _
    $region37: #{mdl_x1_forward.1} parent=1 // pred_fallthru
      _
    // Predicated region
    $region38: #{mdl_x1_forward.1} parent=1 // pred_check
      _
    $region39: #{mdl_x1_forward.1} parent=1 // pred_check_branch
      %461 = sbr.rel (0) target = $region41
    $region40: #{mdl_x1_forward.1} parent=1 // pred_region
      _
    $region41: #{mdl_x1_forward.1} parent=1 // pred_fallthru
      _
    %462 = vsyncpa [#allocation3], 1
    %463 = vsyncpa [#allocation5], 1

</llo_original>
